<compile_context>
chip_gen: v5e
topology: v5e:2x2
jax: 0.10.0
libtpu: 0.0.40
codegen_flags: <defaults>
</compile_context>

<pallas_src>
import functools

import jax
import jax.numpy as jnp
from jax.experimental import pallas as pl
from jax.experimental.pallas import tpu as pltpu

EPS = 1e-5


def _banded_conv_weights(w, width):
    """(3, 3, Cin, Cout) conv weights -> (3, width*Cin, width*Cout) banded matrices.

    big[dy] maps one lane-dense input row (x-major, cin-minor) to one lane-dense
    output row (x-major, cout-minor).  The dx taps and the zero column padding
    (padding=1) are folded into the band structure, so the kernel only needs to
    zero-pad rows.
    """
    _, _, cin, cout = w.shape
    mats = []
    for dy in range(3):
        m = jnp.zeros((width * cin, width * cout), w.dtype)
        for dx in range(3):
            # out column x reads input column x + dx - 1 -> diagonal offset 1 - dx
            shift = jnp.eye(width, k=1 - dx, dtype=w.dtype)              # (W, W)
            m = m + (shift[:, None, :, None] * w[dy, dx][None, :, None, :]
                     ).reshape(width * cin, width * cout)                # kron
        mats.append(m)
    return jnp.stack(mats, axis=0)


def _conv_block_kernel(x_ref, w1_ref, w2_ref, gb_ref,
                       o_ref, xpad1_ref, xpad2_ref, rsel_ref,
                       *, width, cout):
    # x_ref:    (N, H, W*Cin)  f32      lane-dense input slab
    # w1_ref:   (3, W*Cin, W*C) cdt     banded conv-1 weights (one band per dy)
    # w2_ref:   (3*W*C, W*C)   cdt     conv-2 bands concatenated along K
    # gb_ref:   (4, W*C)       f32     rows: g1, be1, g2, be2 (lane-tiled)
    # o_ref:    (N, H, W*C)    f32     lane-dense output slab (128 lanes)
    # xpad1/2:  (N, H+2, ...)  cdt     VMEM scratch for in-kernel row padding
    # rsel_ref: (W*C, W*C)     f32     per-channel replicating reducer (built here)
    n, h, wc_in1 = x_ref.shape
    nh = n * h
    wc = width * cout
    inv_cnt = 1.0 / float(n * h * width)          # 1 / (N*H*W) for BN batch stats

    # Replicating per-channel reducer, generated in-kernel (no DMA):
    # rsel[i, j] = 1 iff lane i and lane j carry the same channel (lane % cout).
    ri = jax.lax.broadcasted_iota(jnp.int32, (wc, wc), 0)
    ci = jax.lax.broadcasted_iota(jnp.int32, (wc, wc), 1)
    if cout & (cout - 1) == 0:                     # static Python branch
        same = (ri & (cout - 1)) == (ci & (cout - 1))
    else:
        same = (ri % cout) == (ci % cout)
    rsel_ref[...] = same.astype(jnp.float32)

    sub = jax.lax.broadcasted_iota(jnp.int32, (8, wc), 0)

    def bn_relu(acc, g_row, b_row):
        # Fused sum / sum-of-squares channel reduction: ONE tiny MXU matmul.
        # LHS row 0 (and rows 2..7, don't-care) = per-lane sum, row 1 = sum of sq.
        rowsum = jnp.sum(acc, axis=0, keepdims=True)                    # (1, W*C)
        sqsum = jnp.sum(acc * acc, axis=0, keepdims=True)               # (1, W*C)
        lhs = jnp.where(sub == 1,
                        jnp.broadcast_to(sqsum, (8, wc)),
                        jnp.broadcast_to(rowsum, (8, wc)))              # (8, W*C)
        red = jnp.dot(lhs, rsel_ref[...], preferred_element_type=jnp.float32)
        mean = red[0:1] * inv_cnt                                       # (1, W*C)
        var = red[1:2] * inv_cnt - mean * mean                          # biased var
        scale = g_row * jax.lax.rsqrt(var + EPS)
        shift = b_row - mean * scale
        return jnp.maximum(acc * scale + shift, 0.0)                    # (N*H, W*C)

    def pad_rows(xpad_ref, interior):
        # pad=1 along H, in VMEM.  Only the two boundary rows are zeroed; the
        # interior is fully overwritten (cast once into compute dtype here).
        cdt = xpad_ref.dtype
        cols = xpad_ref.shape[2]
        xpad_ref[:, 0:1, :] = jnp.zeros((n, 1, cols), cdt)
        xpad_ref[:, h + 1:h + 2, :] = jnp.zeros((n, 1, cols), cdt)
        xpad_ref[:, 1:h + 1, :] = interior.astype(cdt)

    # ---- layer 1: 3x3 conv (3 lane-dense row-tap matmuls, f32 acc) + BN + ReLU --
    # NOTE: conv bias intentionally omitted — exactly cancelled by the BN
    # batch-mean subtraction (dead VPU work otherwise).
    pad_rows(xpad1_ref, x_ref[...])
    acc1 = jnp.zeros((nh, wc), jnp.float32)
    for dy in range(3):
        rows = xpad1_ref[:, dy:dy + h, :].reshape(nh, wc_in1)
        acc1 = acc1 + jnp.dot(rows, w1_ref[dy],
                              preferred_element_type=jnp.float32)
    y1 = bn_relu(acc1, gb_ref[0:1], gb_ref[1:2])

    # ---- layer 2: 3x3 conv with all 3 dy taps fused into ONE K=3*W*C matmul ----
    pad_rows(xpad2_ref, y1.reshape(n, h, wc))
    rows2 = jnp.concatenate(
        [xpad2_ref[:, dy:dy + h, :].reshape(nh, wc) for dy in range(3)], axis=1)
    acc2 = jnp.dot(rows2, w2_ref[...], preferred_element_type=jnp.float32)
    y2 = bn_relu(acc2, gb_ref[2:3], gb_ref[3:4])

    o_ref[...] = y2.reshape(o_ref.shape).astype(o_ref.dtype)


def conv_block_forward(x_nchw, params, *, compute_dtype=jnp.bfloat16):
    """PyTorch conv_block forward: (Conv3x3 + BN + ReLU) x 2.  NCHW in / NCHW out."""
    n, cin, h, w = x_nchw.shape
    cmid = params["w1"].shape[-1]
    cout = params["w2"].shape[-1]
    # conv_block uses out_ch for both layers -> one shared channel reducer.
    assert params["w2"].shape[-2] == cmid and cmid == cout

    # --- wrapper glue: NCHW -> lane-dense (N, H, W*Cin) slab (layout plumbing) ---
    x = jnp.transpose(x_nchw, (0, 2, 3, 1)).reshape(n, h, w * cin)
    # --- weight / BN-parameter relayout (tiny, one-time, weights only) ---
    w1b = _banded_conv_weights(params["w1"], w).astype(compute_dtype)
    w2b = _banded_conv_weights(params["w2"], w).astype(compute_dtype)
    w2cat = w2b.reshape(3 * w * cmid, w * cout)      # dy bands stacked along K
    gb = jnp.stack([jnp.tile(params["g1"], w), jnp.tile(params["be1"], w),
                    jnp.tile(params["g2"], w), jnp.tile(params["be2"], w)],
                   axis=0).astype(jnp.float32)       # (4, W*C): g1, be1, g2, be2
    # params["b1"]/["b2"] (conv biases) are not consumed by the kernel: BN's
    # batch-mean subtraction cancels them exactly.

    vmem = pl.BlockSpec(memory_space=pltpu.MemorySpace.VMEM)
    out = pl.pallas_call(
        functools.partial(_conv_block_kernel, width=w, cout=cout),
        out_shape=jax.ShapeDtypeStruct((n, h, w * cout), jnp.float32),
        in_specs=[vmem] * 4,
        out_specs=vmem,
        scratch_shapes=[
            pltpu.VMEM((n, h + 2, w * cin), compute_dtype),    # padded layer-1 input
            pltpu.VMEM((n, h + 2, w * cmid), compute_dtype),   # padded layer-2 input
            pltpu.VMEM((w * cout, w * cout), jnp.float32),     # channel reducer
        ],
        # Gridless on purpose at this shape: < 1 MiB working set and full-batch
        # BN stats.  Tile over H blocks (two-pass BN reduction) for large shapes.
    )(x, w1b, w2cat, gb)

    return jnp.transpose(out.reshape(n, h, w, cout), (0, 3, 1, 2))     # back to NCHW


# ---------------- pure-JAX reference (PyTorch f32 semantics) ----------------
def _ref_conv_bn_relu(x_nchw, w, b, g, be):
    y = jax.lax.conv_general_dilated(
        x_nchw,
        jnp.transpose(w, (3, 2, 0, 1)),          # (3,3,Cin,Cout) -> OIHW
        window_strides=(1, 1),
        padding=((1, 1), (1, 1)),
        dimension_numbers=("NCHW", "OIHW", "NCHW"),
    )
    y = y + b[None, :, None, None]
    mean = jnp.mean(y, axis=(0, 2, 3), keepdims=True)
    var = jnp.mean((y - mean) ** 2, axis=(0, 2, 3), keepdims=True)     # biased var
    y = (y - mean) * jax.lax.rsqrt(var + EPS)
    y = y * g[None, :, None, None] + be[None, :, None, None]
    return jnp.maximum(y, 0.0)


def _ref_conv_block(x_nchw, p):
    y = _ref_conv_bn_relu(x_nchw, p["w1"], p["b1"], p["g1"], p["be1"])
    y = _ref_conv_bn_relu(y, p["w2"], p["b2"], p["g2"], p["be2"])
    return y


if __name__ == "__main__":
    # conv_block(in_ch=4, out_ch=8) on input (N=2, C=4, H=16, W=16)
    in_ch, out_ch = 4, 8
    N, H, W = 2, 16, 16

    key = jax.random.PRNGKey(0)
    ks = jax.random.split(key, 9)
    params = {
        "w1": jax.random.normal(ks[0], (3, 3, in_ch, out_ch), jnp.float32) * 0.1,
        "b1": jax.random.normal(ks[1], (out_ch,), jnp.float32) * 0.1,
        "g1": 1.0 + jax.random.normal(ks[2], (out_ch,), jnp.float32) * 0.1,
        "be1": jax.random.normal(ks[3], (out_ch,), jnp.float32) * 0.1,
        "w2": jax.random.normal(ks[4], (3, 3, out_ch, out_ch), jnp.float32) * 0.1,
        "b2": jax.random.normal(ks[5], (out_ch,), jnp.float32) * 0.1,
        "g2": 1.0 + jax.random.normal(ks[6], (out_ch,), jnp.float32) * 0.1,
        "be2": jax.random.normal(ks[7], (out_ch,), jnp.float32) * 0.1,
    }
    x = jax.random.normal(ks[8], (N, in_ch, H, W), jnp.float32)

    ref = jax.block_until_ready(_ref_conv_block(x, params))

    # f32 MXU path: tight semantic check against the PyTorch/f32 reference.
    out_f32 = jax.block_until_ready(
        conv_block_forward(x, params, compute_dtype=jnp.float32))
    assert out_f32.shape == (N, out_ch, H, W), out_f32.shape
    assert jnp.allclose(out_f32, ref, atol=1e-4, rtol=1e-4), (
        float(jnp.max(jnp.abs(out_f32 - ref))))

    # Default bf16 MXU path: tolerance sized for bf16 inputs across two stacked
    # 3x3 conv layers (f32 accumulation / f32 BN epilogue).
    out_bf16 = jax.block_until_ready(conv_block_forward(x, params))
    assert out_bf16.shape == (N, out_ch, H, W), out_bf16.shape
    assert jnp.allclose(out_bf16, ref, atol=5e-2, rtol=5e-2), (
        float(jnp.max(jnp.abs(out_bf16 - ref))))

    print("KERNEL_OK")
</pallas_src>

<mosaic_0001>
module attributes {stable_mosaic.version = 11 : i64} {
  func.func @_conv_block_kernel(%arg0: memref<2x16x64xf32, #tpu.memory_space<vmem>>, %arg1: memref<3x64x128xf32, #tpu.memory_space<vmem>>, %arg2: memref<384x128xf32, #tpu.memory_space<vmem>>, %arg3: memref<4x128xf32, #tpu.memory_space<vmem>>, %arg4: memref<2x16x128xf32, #tpu.memory_space<vmem>>, %arg5: memref<2x18x64xf32, #tpu.memory_space<vmem>>, %arg6: memref<2x18x128xf32, #tpu.memory_space<vmem>>, %arg7: memref<128x128xf32, #tpu.memory_space<vmem>>) attributes {dimension_semantics = [], scalar_prefetch = 0 : i64, scratch_operands = 3 : i64, tpu.core_type = #tpu.core_type<tc>} {
    %0 = tpu.iota {dimensions = array<i32: 0>} : vector<128x128xi32>
    %1 = tpu.iota {dimensions = array<i32: 1>} : vector<128x128xi32>
    %c7_i32 = arith.constant 7 : i32
    %2 = vector.broadcast %c7_i32 : i32 to vector<128x128xi32>
    %3 = arith.andi %0, %2 : vector<128x128xi32>
    %c7_i32_0 = arith.constant 7 : i32
    %4 = vector.broadcast %c7_i32_0 : i32 to vector<128x128xi32>
    %5 = arith.andi %1, %4 : vector<128x128xi32>
    %6 = arith.cmpi eq, %3, %5 : vector<128x128xi32>
    %7 = arith.extui %6 : vector<128x128xi1> to vector<128x128xi32>
    %8 = arith.sitofp %7 : vector<128x128xi32> to vector<128x128xf32>
    %c0 = arith.constant 0 : index
    %c0_1 = arith.constant 0 : index
    %9 = vector.load %arg7[%c0, %c0_1] : memref<128x128xf32, #tpu.memory_space<vmem>>, vector<128x128xf32>
    tpu.vector_store %arg7[%c0, %c0_1], %8 {strides = array<i32>} : memref<128x128xf32, #tpu.memory_space<vmem>>, vector<128x128xf32>,
    %10 = tpu.iota {dimensions = array<i32: 0>} : vector<8x128xi32>
    %c0_2 = arith.constant 0 : index
    %c0_3 = arith.constant 0 : index
    %c0_4 = arith.constant 0 : index
    %11 = vector.load %arg0[%c0_2, %c0_3, %c0_4] : memref<2x16x64xf32, #tpu.memory_space<vmem>>, vector<2x16x64xf32>
    %cst = arith.constant 0.000000e+00 : f32
    %12 = vector.broadcast %cst : f32 to vector<2x1x64xf32>
    %c0_5 = arith.constant 0 : index
    %c0_6 = arith.constant 0 : index
    %c0_7 = arith.constant 0 : index
    %13 = vector.load %arg5[%c0_5, %c0_6, %c0_7] : memref<2x18x64xf32, #tpu.memory_space<vmem>>, vector<2x1x64xf32>
    tpu.vector_store %arg5[%c0_5, %c0_6, %c0_7], %12 {strides = array<i32>} : memref<2x18x64xf32, #tpu.memory_space<vmem>>, vector<2x1x64xf32>,
    %cst_8 = arith.constant 0.000000e+00 : f32
    %14 = vector.broadcast %cst_8 : f32 to vector<2x1x64xf32>
    %c0_9 = arith.constant 0 : index
    %c17 = arith.constant 17 : index
    %c0_10 = arith.constant 0 : index
    %15 = vector.load %arg5[%c0_9, %c17, %c0_10] : memref<2x18x64xf32, #tpu.memory_space<vmem>>, vector<2x1x64xf32>
    tpu.vector_store %arg5[%c0_9, %c17, %c0_10], %14 {strides = array<i32>} : memref<2x18x64xf32, #tpu.memory_space<vmem>>, vector<2x1x64xf32>,
    %c0_11 = arith.constant 0 : index
    %c1 = arith.constant 1 : index
    %c0_12 = arith.constant 0 : index
    %16 = vector.load %arg5[%c0_11, %c1, %c0_12] : memref<2x18x64xf32, #tpu.memory_space<vmem>>, vector<2x16x64xf32>
    tpu.vector_store %arg5[%c0_11, %c1, %c0_12], %11 {strides = array<i32>} : memref<2x18x64xf32, #tpu.memory_space<vmem>>, vector<2x16x64xf32>,
    %cst_13 = arith.constant 0.000000e+00 : f32
    %17 = vector.broadcast %cst_13 : f32 to vector<32x128xf32>
    %c0_14 = arith.constant 0 : index
    %c0_15 = arith.constant 0 : index
    %c0_16 = arith.constant 0 : index
    %18 = vector.load %arg5[%c0_14, %c0_15, %c0_16] : memref<2x18x64xf32, #tpu.memory_space<vmem>>, vector<2x16x64xf32>
    %19 = vector.shape_cast %18 : vector<2x16x64xf32> to vector<32x64xf32>
    %c0_17 = arith.constant 0 : index
    %c0_18 = arith.constant 0 : index
    %c0_19 = arith.constant 0 : index
    %20 = vector.load %arg1[%c0_17, %c0_18, %c0_19] : memref<3x64x128xf32, #tpu.memory_space<vmem>>, vector<1x64x128xf32>
    %21 = vector.shape_cast %20 : vector<1x64x128xf32> to vector<64x128xf32>
    %cst_20 = arith.constant dense<0.000000e+00> : vector<32x128xf32>
    %22 = tpu.matmul %19, %21, %cst_20 {dimension_numbers = #tpu.dot_dimension_numbers<[1], [0], [0], [1], [0, 0, 1, 1], [], []>} : vector<32x64xf32>, vector<64x128xf32>, vector<32x128xf32> -> vector<32x128xf32>
    %23 = arith.addf %17, %22 : vector<32x128xf32>
    %c0_21 = arith.constant 0 : index
    %c1_22 = arith.constant 1 : index
    %c0_23 = arith.constant 0 : index
    %24 = vector.load %arg5[%c0_21, %c1_22, %c0_23] : memref<2x18x64xf32, #tpu.memory_space<vmem>>, vector<2x16x64xf32>
    %25 = vector.shape_cast %24 : vector<2x16x64xf32> to vector<32x64xf32>
    %c1_24 = arith.constant 1 : index
    %c0_25 = arith.constant 0 : index
    %c0_26 = arith.constant 0 : index
    %26 = vector.load %arg1[%c1_24, %c0_25, %c0_26] : memref<3x64x128xf32, #tpu.memory_space<vmem>>, vector<1x64x128xf32>
    %27 = vector.shape_cast %26 : vector<1x64x128xf32> to vector<64x128xf32>
    %cst_27 = arith.constant dense<0.000000e+00> : vector<32x128xf32>
    %28 = tpu.matmul %25, %27, %cst_27 {dimension_numbers = #tpu.dot_dimension_numbers<[1], [0], [0], [1], [0, 0, 1, 1], [], []>} : vector<32x64xf32>, vector<64x128xf32>, vector<32x128xf32> -> vector<32x128xf32>
    %29 = arith.addf %23, %28 : vector<32x128xf32>
    %c0_28 = arith.constant 0 : index
    %c2 = arith.constant 2 : index
    %c0_29 = arith.constant 0 : index
    %30 = vector.load %arg5[%c0_28, %c2, %c0_29] : memref<2x18x64xf32, #tpu.memory_space<vmem>>, vector<2x16x64xf32>
    %31 = vector.shape_cast %30 : vector<2x16x64xf32> to vector<32x64xf32>
    %c2_30 = arith.constant 2 : index
    %c0_31 = arith.constant 0 : index
    %c0_32 = arith.constant 0 : index
    %32 = vector.load %arg1[%c2_30, %c0_31, %c0_32] : memref<3x64x128xf32, #tpu.memory_space<vmem>>, vector<1x64x128xf32>
    %33 = vector.shape_cast %32 : vector<1x64x128xf32> to vector<64x128xf32>
    %cst_33 = arith.constant dense<0.000000e+00> : vector<32x128xf32>
    %34 = tpu.matmul %31, %33, %cst_33 {dimension_numbers = #tpu.dot_dimension_numbers<[1], [0], [0], [1], [0, 0, 1, 1], [], []>} : vector<32x64xf32>, vector<64x128xf32>, vector<32x128xf32> -> vector<32x128xf32>
    %35 = arith.addf %29, %34 : vector<32x128xf32>
    %c0_34 = arith.constant 0 : index
    %c0_35 = arith.constant 0 : index
    %36 = vector.load %arg3[%c0_34, %c0_35] : memref<4x128xf32, #tpu.memory_space<vmem>>, vector<1x128xf32>
    %c1_36 = arith.constant 1 : index
    %c0_37 = arith.constant 0 : index
    %37 = vector.load %arg3[%c1_36, %c0_37] : memref<4x128xf32, #tpu.memory_space<vmem>>, vector<1x128xf32>
    %cst_38 = arith.constant dense<0.000000e+00> : vector<128xf32>
    %38 = vector.multi_reduction <add>, %35, %cst_38 [0] : vector<32x128xf32> to vector<128xf32>
    %39 = vector.shape_cast %38 : vector<128xf32> to vector<1x128xf32>
    %40 = arith.mulf %35, %35 : vector<32x128xf32>
    %cst_39 = arith.constant dense<0.000000e+00> : vector<128xf32>
    %41 = vector.multi_reduction <add>, %40, %cst_39 [0] : vector<32x128xf32> to vector<128xf32>
    %42 = vector.shape_cast %41 : vector<128xf32> to vector<1x128xf32>
    %c1_i32 = arith.constant 1 : i32
    %43 = vector.broadcast %c1_i32 : i32 to vector<8x128xi32>
    %44 = arith.cmpi eq, %10, %43 : vector<8x128xi32>
    %45 = vector.shape_cast %42 : vector<1x128xf32> to vector<1x128xf32>
    %46 = vector.broadcast %45 : vector<1x128xf32> to vector<8x128xf32>
    %47 = vector.shape_cast %39 : vector<1x128xf32> to vector<1x128xf32>
    %48 = vector.broadcast %47 : vector<1x128xf32> to vector<8x128xf32>
    %49 = arith.select %44, %46, %48 : vector<8x128xi1>, vector<8x128xf32>
    %c0_40 = arith.constant 0 : index
    %c0_41 = arith.constant 0 : index
    %50 = vector.load %arg7[%c0_40, %c0_41] : memref<128x128xf32, #tpu.memory_space<vmem>>, vector<128x128xf32>
    %cst_42 = arith.constant dense<0.000000e+00> : vector<8x128xf32>
    %51 = tpu.matmul %49, %50, %cst_42 {dimension_numbers = #tpu.dot_dimension_numbers<[1], [0], [0], [1], [0, 0, 1, 1], [], []>} : vector<8x128xf32>, vector<128x128xf32>, vector<8x128xf32> -> vector<8x128xf32>
    %52 = vector.extract_strided_slice %51 {offsets = [0, 0], sizes = [1, 128], strides = [1, 1]} : vector<8x128xf32> to vector<1x128xf32>
    %cst_43 = arith.constant 0.001953125 : f32
    %53 = vector.broadcast %cst_43 : f32 to vector<1x128xf32>
    %54 = arith.mulf %52, %53 : vector<1x128xf32>
    %55 = vector.extract_strided_slice %51 {offsets = [1, 0], sizes = [1, 128], strides = [1, 1]} : vector<8x128xf32> to vector<1x128xf32>
    %cst_44 = arith.constant 0.001953125 : f32
    %56 = vector.broadcast %cst_44 : f32 to vector<1x128xf32>
    %57 = arith.mulf %55, %56 : vector<1x128xf32>
    %58 = arith.mulf %54, %54 : vector<1x128xf32>
    %59 = arith.subf %57, %58 : vector<1x128xf32>
    %cst_45 = arith.constant 9.99999974E-6 : f32
    %60 = vector.broadcast %cst_45 : f32 to vector<1x128xf32>
    %61 = arith.addf %59, %60 : vector<1x128xf32>
    %62 = math.rsqrt %61 : vector<1x128xf32>
    %63 = arith.mulf %36, %62 : vector<1x128xf32>
    %64 = arith.mulf %54, %63 : vector<1x128xf32>
    %65 = arith.subf %37, %64 : vector<1x128xf32>
    %66 = vector.broadcast %63 : vector<1x128xf32> to vector<32x128xf32>
    %67 = arith.mulf %35, %66 : vector<32x128xf32>
    %68 = vector.broadcast %65 : vector<1x128xf32> to vector<32x128xf32>
    %69 = arith.addf %67, %68 : vector<32x128xf32>
    %cst_46 = arith.constant 0.000000e+00 : f32
    %70 = vector.broadcast %cst_46 : f32 to vector<32x128xf32>
    %71 = arith.maximumf %69, %70 : vector<32x128xf32>
    %72 = vector.shape_cast %71 : vector<32x128xf32> to vector<2x16x128xf32>
    %cst_47 = arith.constant 0.000000e+00 : f32
    %73 = vector.broadcast %cst_47 : f32 to vector<2x1x128xf32>
    %c0_48 = arith.constant 0 : index
    %c0_49 = arith.constant 0 : index
    %c0_50 = arith.constant 0 : index
    %74 = vector.load %arg6[%c0_48, %c0_49, %c0_50] : memref<2x18x128xf32, #tpu.memory_space<vmem>>, vector<2x1x128xf32>
    tpu.vector_store %arg6[%c0_48, %c0_49, %c0_50], %73 {strides = array<i32>} : memref<2x18x128xf32, #tpu.memory_space<vmem>>, vector<2x1x128xf32>,
    %cst_51 = arith.constant 0.000000e+00 : f32
    %75 = vector.broadcast %cst_51 : f32 to vector<2x1x128xf32>
    %c0_52 = arith.constant 0 : index
    %c17_53 = arith.constant 17 : index
    %c0_54 = arith.constant 0 : index
    %76 = vector.load %arg6[%c0_52, %c17_53, %c0_54] : memref<2x18x128xf32, #tpu.memory_space<vmem>>, vector<2x1x128xf32>
    tpu.vector_store %arg6[%c0_52, %c17_53, %c0_54], %75 {strides = array<i32>} : memref<2x18x128xf32, #tpu.memory_space<vmem>>, vector<2x1x128xf32>,
    %c0_55 = arith.constant 0 : index
    %c1_56 = arith.constant 1 : index
    %c0_57 = arith.constant 0 : index
    %77 = vector.load %arg6[%c0_55, %c1_56, %c0_57] : memref<2x18x128xf32, #tpu.memory_space<vmem>>, vector<2x16x128xf32>
    tpu.vector_store %arg6[%c0_55, %c1_56, %c0_57], %72 {strides = array<i32>} : memref<2x18x128xf32, #tpu.memory_space<vmem>>, vector<2x16x128xf32>,
    %c0_58 = arith.constant 0 : index
    %c0_59 = arith.constant 0 : index
    %c0_60 = arith.constant 0 : index
    %78 = vector.load %arg6[%c0_58, %c0_59, %c0_60] : memref<2x18x128xf32, #tpu.memory_space<vmem>>, vector<2x16x128xf32>
    %79 = vector.shape_cast %78 : vector<2x16x128xf32> to vector<32x128xf32>
    %c0_61 = arith.constant 0 : index
    %c1_62 = arith.constant 1 : index
    %c0_63 = arith.constant 0 : index
    %80 = vector.load %arg6[%c0_61, %c1_62, %c0_63] : memref<2x18x128xf32, #tpu.memory_space<vmem>>, vector<2x16x128xf32>
    %81 = vector.shape_cast %80 : vector<2x16x128xf32> to vector<32x128xf32>
    %c0_64 = arith.constant 0 : index
    %c2_65 = arith.constant 2 : index
    %c0_66 = arith.constant 0 : index
    %82 = vector.load %arg6[%c0_64, %c2_65, %c0_66] : memref<2x18x128xf32, #tpu.memory_space<vmem>>, vector<2x16x128xf32>
    %83 = vector.shape_cast %82 : vector<2x16x128xf32> to vector<32x128xf32>
    %84 = tpu.concatenate %79, %81, %83 in 1 : vector<32x128xf32>, vector<32x128xf32>, vector<32x128xf32> -> vector<32x384xf32>
    %c0_67 = arith.constant 0 : index
    %c0_68 = arith.constant 0 : index
    %85 = vector.load %arg2[%c0_67, %c0_68] : memref<384x128xf32, #tpu.memory_space<vmem>>, vector<384x128xf32>
    %cst_69 = arith.constant dense<0.000000e+00> : vector<32x128xf32>
    %86 = tpu.matmul %84, %85, %cst_69 {dimension_numbers = #tpu.dot_dimension_numbers<[1], [0], [0], [1], [0, 0, 1, 1], [], []>} : vector<32x384xf32>, vector<384x128xf32>, vector<32x128xf32> -> vector<32x128xf32>
    %c2_70 = arith.constant 2 : index
    %c0_71 = arith.constant 0 : index
    %87 = vector.load %arg3[%c2_70, %c0_71] : memref<4x128xf32, #tpu.memory_space<vmem>>, vector<1x128xf32>
    %c3 = arith.constant 3 : index
    %c0_72 = arith.constant 0 : index
    %88 = vector.load %arg3[%c3, %c0_72] : memref<4x128xf32, #tpu.memory_space<vmem>>, vector<1x128xf32>
    %cst_73 = arith.constant dense<0.000000e+00> : vector<128xf32>
    %89 = vector.multi_reduction <add>, %86, %cst_73 [0] : vector<32x128xf32> to vector<128xf32>
    %90 = vector.shape_cast %89 : vector<128xf32> to vector<1x128xf32>
    %91 = arith.mulf %86, %86 : vector<32x128xf32>
    %cst_74 = arith.constant dense<0.000000e+00> : vector<128xf32>
    %92 = vector.multi_reduction <add>, %91, %cst_74 [0] : vector<32x128xf32> to vector<128xf32>
    %93 = vector.shape_cast %92 : vector<128xf32> to vector<1x128xf32>
    %c1_i32_75 = arith.constant 1 : i32
    %94 = vector.broadcast %c1_i32_75 : i32 to vector<8x128xi32>
    %95 = arith.cmpi eq, %10, %94 : vector<8x128xi32>
    %96 = vector.shape_cast %93 : vector<1x128xf32> to vector<1x128xf32>
    %97 = vector.broadcast %96 : vector<1x128xf32> to vector<8x128xf32>
    %98 = vector.shape_cast %90 : vector<1x128xf32> to vector<1x128xf32>
    %99 = vector.broadcast %98 : vector<1x128xf32> to vector<8x128xf32>
    %100 = arith.select %95, %97, %99 : vector<8x128xi1>, vector<8x128xf32>
    %c0_76 = arith.constant 0 : index
    %c0_77 = arith.constant 0 : index
    %101 = vector.load %arg7[%c0_76, %c0_77] : memref<128x128xf32, #tpu.memory_space<vmem>>, vector<128x128xf32>
    %cst_78 = arith.constant dense<0.000000e+00> : vector<8x128xf32>
    %102 = tpu.matmul %100, %101, %cst_78 {dimension_numbers = #tpu.dot_dimension_numbers<[1], [0], [0], [1], [0, 0, 1, 1], [], []>} : vector<8x128xf32>, vector<128x128xf32>, vector<8x128xf32> -> vector<8x128xf32>
    %103 = vector.extract_strided_slice %102 {offsets = [0, 0], sizes = [1, 128], strides = [1, 1]} : vector<8x128xf32> to vector<1x128xf32>
    %cst_79 = arith.constant 0.001953125 : f32
    %104 = vector.broadcast %cst_79 : f32 to vector<1x128xf32>
    %105 = arith.mulf %103, %104 : vector<1x128xf32>
    %106 = vector.extract_strided_slice %102 {offsets = [1, 0], sizes = [1, 128], strides = [1, 1]} : vector<8x128xf32> to vector<1x128xf32>
    %cst_80 = arith.constant 0.001953125 : f32
    %107 = vector.broadcast %cst_80 : f32 to vector<1x128xf32>
    %108 = arith.mulf %106, %107 : vector<1x128xf32>
    %109 = arith.mulf %105, %105 : vector<1x128xf32>
    %110 = arith.subf %108, %109 : vector<1x128xf32>
    %cst_81 = arith.constant 9.99999974E-6 : f32
    %111 = vector.broadcast %cst_81 : f32 to vector<1x128xf32>
    %112 = arith.addf %110, %111 : vector<1x128xf32>
    %113 = math.rsqrt %112 : vector<1x128xf32>
    %114 = arith.mulf %87, %113 : vector<1x128xf32>
    %115 = arith.mulf %105, %114 : vector<1x128xf32>
    %116 = arith.subf %88, %115 : vector<1x128xf32>
    %117 = vector.broadcast %114 : vector<1x128xf32> to vector<32x128xf32>
    %118 = arith.mulf %86, %117 : vector<32x128xf32>
    %119 = vector.broadcast %116 : vector<1x128xf32> to vector<32x128xf32>
    %120 = arith.addf %118, %119 : vector<32x128xf32>
    %cst_82 = arith.constant 0.000000e+00 : f32
    %121 = vector.broadcast %cst_82 : f32 to vector<32x128xf32>
    %122 = arith.maximumf %120, %121 : vector<32x128xf32>
    %123 = vector.shape_cast %122 : vector<32x128xf32> to vector<2x16x128xf32>
    %c0_83 = arith.constant 0 : index
    %c0_84 = arith.constant 0 : index
    %c0_85 = arith.constant 0 : index
    %124 = vector.load %arg4[%c0_83, %c0_84, %c0_85] : memref<2x16x128xf32, #tpu.memory_space<vmem>>, vector<2x16x128xf32>
    tpu.vector_store %arg4[%c0_83, %c0_84, %c0_85], %123 {strides = array<i32>} : memref<2x16x128xf32, #tpu.memory_space<vmem>>, vector<2x16x128xf32>,
    return
  }
}

</mosaic_0001>

<llo_original>
// kernel: tpu_custom_call.1
$region0: #{tpu_custom_call.1}
  #allocation0 [shape = 'u32[]', space=smem, size = 0x4, offset = 0x4, fixed_abs, tag = 'smem constant byte address 0x4 - core index']
  #allocation1 [shape = 'u32[72,128]{1,0:T(1,128)}', space=vmem, size = 0x9000, scoped, tag = 'internal scratch']
  #allocation2 [shape = 'f32[2,18,64]{2,1,0:T(8,128)}', space=vmem, size = 0x6000, scoped, tag = 'scratch operand']
  #allocation3 [shape = 'f32[2,18,128]{2,1,0:T(8,128)}', space=vmem, size = 0x6000, scoped, tag = 'scratch operand']
  #allocation4 [shape = 'f32[128,128]{1,0:T(8,128)}', space=vmem, size = 0x10000, scoped, tag = 'scratch operand']
  %s0 = inlined_call_operand.hbm [shape: f32[2,16,64], index: 0, kind: input, shape index: {}]
  %s1 = inlined_call_operand.hbm [shape: f32[3,64,128], index: 1, kind: input, shape index: {}]
  %s2 = inlined_call_operand.hbm [shape: f32[384,128], index: 2, kind: input, shape index: {}]
  %s3 = inlined_call_operand.hbm [shape: f32[4,128], index: 3, kind: input, shape index: {}]
  %s4 = inlined_call_operand.hbm [shape: f32[2,16,128], index: 4, kind: output, shape index: {}]
  %s5 = sld [smem:[#allocation0]]
  $region42: #{tpu_custom_call.1} parent=0
    _
  %s7 = ssub.s32 1, %s5
  %s8 = scalar_select 0, %s7, %s5
  $region1: #{tpu_custom_call.1} parent=0
    #allocation5 [shape = 'u8[16384]{0}', space=vmem, size = 0x4000, scoped, tag = 'input window, operand 0, single buffered']
    #allocation6 [shape = 's32[1]{0}', space=sflag, size = 0x4, scoped, tag = 'scoped memory for tpu_custom_call.1']
    #allocation7 [shape = 's32[1]{0}', space=sflag, size = 0x4, scoped, tag = 'scoped memory for tpu_custom_call.1']
    #allocation8 [shape = 'u8[98304]{0}', space=vmem, size = 0x18000, scoped, tag = 'input window, operand 1, single buffered']
    #allocation9 [shape = 's32[1]{0}', space=sflag, size = 0x4, scoped, tag = 'scoped memory for tpu_custom_call.1']
    #allocation10 [shape = 'u8[196608]{0}', space=vmem, size = 0x30000, scoped, tag = 'input window, operand 2, single buffered']
    #allocation11 [shape = 'u8[2048]{0}', space=vmem, size = 0x800, scoped, tag = 'input window, operand 3, single buffered']
    #allocation12 [shape = 's32[1]{0}', space=sflag, size = 0x4, scoped, tag = 'scoped memory for tpu_custom_call.1']
    #allocation13 [shape = 'u8[16384]{0}', space=vmem, size = 0x4000, scoped, tag = 'output window, operand 0, single buffered']
    %9 = vsyncpa [#allocation6], 0
    %10 = vsyncpa [#allocation9], 0
    %11 = vsyncpa [#allocation12], 0
    %12 = vsyncpa [#allocation7], 0
    // Predicated region
    $region2: #{tpu_custom_call.1} parent=1 // pred_check
      _
    $region3: #{tpu_custom_call.1} parent=1 // pred_check_branch
      %14 = sbr.rel (0) target = $region5
    $region4: #{tpu_custom_call.1} parent=1 // pred_region
      %16 = vsyncadd [#allocation6], 0
      %s17 = sshll.u32 %s0, 4
      %s18 = int_to_ptr.hbm [resolvable:$true] %s17
      %s19 = sshll.u32 [#allocation5], 4
      %s20 = int_to_ptr.vmem [resolvable:$true] %s19
      %25 = dma.hbm_to_vmem [thread:$0]  %s18, 512, %s20, [#allocation6], 128, 128, 8
    $region5: #{tpu_custom_call.1} parent=1 // pred_fallthru
      _
    // Predicated region
    $region6: #{tpu_custom_call.1} parent=1 // pred_check
      _
    $region7: #{tpu_custom_call.1} parent=1 // pred_check_branch
      %27 = sbr.rel (0) target = $region9
    $region8: #{tpu_custom_call.1} parent=1 // pred_region
      %29 = vsyncadd [#allocation9], 0
      %s30 = sshll.u32 %s1, 4
      %s31 = int_to_ptr.hbm [resolvable:$true] %s30
      %s32 = sshll.u32 [#allocation8], 4
      %s33 = int_to_ptr.vmem [resolvable:$true] %s32
      %38 = dma.hbm_to_vmem [thread:$0]  %s31, 3072, %s33, [#allocation9], 128, 128, 8
    $region9: #{tpu_custom_call.1} parent=1 // pred_fallthru
      _
    // Predicated region
    $region10: #{tpu_custom_call.1} parent=1 // pred_check
      _
    $region11: #{tpu_custom_call.1} parent=1 // pred_check_branch
      %40 = sbr.rel (0) target = $region13
    $region12: #{tpu_custom_call.1} parent=1 // pred_region
      %42 = vsyncadd [#allocation9], 0
      %s43 = sshll.u32 %s2, 4
      %s44 = int_to_ptr.hbm [resolvable:$true] %s43
      %s45 = sshll.u32 [#allocation10], 4
      %s46 = int_to_ptr.vmem [resolvable:$true] %s45
      %51 = dma.hbm_to_vmem [thread:$0]  %s44, 6144, %s46, [#allocation9], 128, 128, 8
    $region13: #{tpu_custom_call.1} parent=1 // pred_fallthru
      _
    // Predicated region
    $region14: #{tpu_custom_call.1} parent=1 // pred_check
      _
    $region15: #{tpu_custom_call.1} parent=1 // pred_check_branch
      %53 = sbr.rel (0) target = $region17
    $region16: #{tpu_custom_call.1} parent=1 // pred_region
      %55 = vsyncadd [#allocation12], 0
      %s57 = sshll.u32 %s3, 4
      %s58 = int_to_ptr.hbm [resolvable:$true] %s57
      %s59 = sshll.u32 [#allocation11], 4
      %s60 = int_to_ptr.vmem [resolvable:$true] %s59
      %62 = dma.hbm_to_vmem [thread:$0]  %s58, 64, %s60, [#allocation12]
    $region17: #{tpu_custom_call.1} parent=1 // pred_fallthru
      _
    // Predicated region
    $region18: #{tpu_custom_call.1} parent=1 // pred_check
      _
    $region19: #{tpu_custom_call.1} parent=1 // pred_check_branch
      %64 = sbr.rel (0) target = $region21
    $region20: #{tpu_custom_call.1} parent=1 // pred_region
      %66 = dma.done [#allocation6], 512
    $region21: #{tpu_custom_call.1} parent=1 // pred_fallthru
      _
    // Predicated region
    $region22: #{tpu_custom_call.1} parent=1 // pred_check
      _
    $region23: #{tpu_custom_call.1} parent=1 // pred_check_branch
      %68 = sbr.rel (0) target = $region25
    $region24: #{tpu_custom_call.1} parent=1 // pred_region
      %70 = dma.done [#allocation9], 3072
    $region25: #{tpu_custom_call.1} parent=1 // pred_fallthru
      _
    // Predicated region
    $region26: #{tpu_custom_call.1} parent=1 // pred_check
      _
    $region27: #{tpu_custom_call.1} parent=1 // pred_check_branch
      %72 = sbr.rel (0) target = $region29
    $region28: #{tpu_custom_call.1} parent=1 // pred_region
      %74 = dma.done [#allocation9], 6144
    $region29: #{tpu_custom_call.1} parent=1 // pred_fallthru
      _
    // Predicated region
    $region30: #{tpu_custom_call.1} parent=1 // pred_check
      _
    $region31: #{tpu_custom_call.1} parent=1 // pred_check_branch
      %76 = sbr.rel (0) target = $region33
    $region32: #{tpu_custom_call.1} parent=1 // pred_region
      %78 = dma.done [#allocation12], 64
    $region33: #{tpu_custom_call.1} parent=1 // pred_fallthru
      _
    %v79 = vlaneseq
    %v80 = vshrl.u32 %v79, 7
    %v81 = vadd.s32 %v80, 8
    %v82 = vadd.s32 %v80, 16
    %v83 = vadd.s32 %v80, 24
    %v84 = vadd.s32 %v80, 32
    %v85 = vadd.s32 %v80, 40
    %v86 = vadd.s32 %v80, 48
    %v87 = vadd.s32 %v80, 56
    %v88 = vadd.s32 %v80, 64
    %v89 = vadd.s32 %v80, 72
    %v90 = vadd.s32 %v80, 80
    %v91 = vadd.s32 %v80, 88
    %v92 = vadd.s32 %v80, 96
    %v93 = vadd.s32 %v80, 104
    %v94 = vadd.s32 %v80, 112
    %v95 = vadd.s32 %v80, 120
    %v96 = vlaneseq
    %v97 = vand.u32 %v96, 127
    %v98 = vand.u32 %v80, 7
    %v99 = vand.u32 %v81, 7
    %v100 = vand.u32 %v82, 7
    %v101 = vand.u32 %v83, 7
    %v102 = vand.u32 %v84, 7
    %v103 = vand.u32 %v85, 7
    %v104 = vand.u32 %v86, 7
    %v105 = vand.u32 %v87, 7
    %v106 = vand.u32 %v88, 7
    %v107 = vand.u32 %v89, 7
    %v108 = vand.u32 %v90, 7
    %v109 = vand.u32 %v91, 7
    %v110 = vand.u32 %v92, 7
    %v111 = vand.u32 %v93, 7
    %v112 = vand.u32 %v94, 7
    %v113 = vand.u32 %v95, 7
    %v114 = vand.u32 %v97, 7
    %vm115 = vcmp.eq.s32.totalorder %v98, %v114
    %vm116 = vcmp.eq.s32.totalorder %v99, %v114
    %vm117 = vcmp.eq.s32.totalorder %v100, %v114
    %vm118 = vcmp.eq.s32.totalorder %v101, %v114
    %vm119 = vcmp.eq.s32.totalorder %v102, %v114
    %vm120 = vcmp.eq.s32.totalorder %v103, %v114
    %vm121 = vcmp.eq.s32.totalorder %v104, %v114
    %vm122 = vcmp.eq.s32.totalorder %v105, %v114
    %vm123 = vcmp.eq.s32.totalorder %v106, %v114
    %vm124 = vcmp.eq.s32.totalorder %v107, %v114
    %vm125 = vcmp.eq.s32.totalorder %v108, %v114
    %vm126 = vcmp.eq.s32.totalorder %v109, %v114
    %vm127 = vcmp.eq.s32.totalorder %v110, %v114
    %vm128 = vcmp.eq.s32.totalorder %v111, %v114
    %vm129 = vcmp.eq.s32.totalorder %v112, %v114
    %vm130 = vcmp.eq.s32.totalorder %v113, %v114
    %v131 = vsel %vm115, 1, 0
    %v132 = vsel %vm116, 1, 0
    %v133 = vsel %vm117, 1, 0
    %v134 = vsel %vm118, 1, 0
    %v135 = vsel %vm119, 1, 0
    %v136 = vsel %vm120, 1, 0
    %v137 = vsel %vm121, 1, 0
    %v138 = vsel %vm122, 1, 0
    %v139 = vsel %vm123, 1, 0
    %v140 = vsel %vm124, 1, 0
    %v141 = vsel %vm125, 1, 0
    %v142 = vsel %vm126, 1, 0
    %v143 = vsel %vm127, 1, 0
    %v144 = vsel %vm128, 1, 0
    %v145 = vsel %vm129, 1, 0
    %v146 = vsel %vm130, 1, 0
    %v147 = vcvt.s32.f32 %v131
    %v148 = vcvt.s32.f32 %v132
    %v149 = vcvt.s32.f32 %v133
    %v150 = vcvt.s32.f32 %v134
    %v151 = vcvt.s32.f32 %v135
    %v152 = vcvt.s32.f32 %v136
    %v153 = vcvt.s32.f32 %v137
    %v154 = vcvt.s32.f32 %v138
    %v155 = vcvt.s32.f32 %v139
    %v156 = vcvt.s32.f32 %v140
    %v157 = vcvt.s32.f32 %v141
    %v158 = vcvt.s32.f32 %v142
    %v159 = vcvt.s32.f32 %v143
    %v160 = vcvt.s32.f32 %v144
    %v161 = vcvt.s32.f32 %v145
    %v162 = vcvt.s32.f32 %v146
    %163 = vst [vmem:[#allocation4] sm:$0xff] %v147
    %164 = vst [vmem:[#allocation4 + $0x8] sm:$0xff] %v148
    %165 = vst [vmem:[#allocation4 + $0x10] sm:$0xff] %v149
    %166 = vst [vmem:[#allocation4 + $0x18] sm:$0xff] %v150
    %167 = vst [vmem:[#allocation4 + $0x20] sm:$0xff] %v151
    %168 = vst [vmem:[#allocation4 + $0x28] sm:$0xff] %v152
    %169 = vst [vmem:[#allocation4 + $0x30] sm:$0xff] %v153
    %170 = vst [vmem:[#allocation4 + $0x38] sm:$0xff] %v154
    %171 = vst [vmem:[#allocation4 + $0x40] sm:$0xff] %v155
    %172 = vst [vmem:[#allocation4 + $0x48] sm:$0xff] %v156
    %173 = vst [vmem:[#allocation4 + $0x50] sm:$0xff] %v157
    %174 = vst [vmem:[#allocation4 + $0x58] sm:$0xff] %v158
    %175 = vst [vmem:[#allocation4 + $0x60] sm:$0xff] %v159
    %176 = vst [vmem:[#allocation4 + $0x68] sm:$0xff] %v160
    %177 = vst [vmem:[#allocation4 + $0x70] sm:$0xff] %v161
    %178 = vst [vmem:[#allocation4 + $0x78] sm:$0xff] %v162
    %v179 = vld [vmem:[#allocation5] sm:$0xff]
    %v180 = vld [vmem:[#allocation5 + $0x8] sm:$0xff]
    %v181 = vld [vmem:[#allocation5 + $0x10] sm:$0xff]
    %v182 = vld [vmem:[#allocation5 + $0x18] sm:$0xff]
    %vm183 = vcmask 516096
    %184 = vst.msk [vmem:[#allocation2] sm:$0x1] %vm183, 0.0
    %185 = vst.msk [vmem:[#allocation2 + $0x18] sm:$0x1] %vm183, 0.0
    %186 = vst.msk [vmem:[#allocation2 + $0x11] sm:$0x1] %vm183, 0.0
    %187 = vst.msk [vmem:[#allocation2 + $0x29] sm:$0x1] %vm183, 0.0
    %vm188 = vcmask 523264
    %189 = vst.msk [vmem:[#allocation2 + $0x1] sm:$0xff] %vm188, %v179
    %190 = vst.msk [vmem:[#allocation2 + $0x9] sm:$0xff] %vm188, %v180
    %191 = vst.msk [vmem:[#allocation2 + $0x19] sm:$0xff] %vm188, %v181
    %192 = vst.msk [vmem:[#allocation2 + $0x21] sm:$0xff] %vm188, %v182
    %v193 = vld [vmem:[#allocation2] sm:$0xff]
    %v194 = vld [vmem:[#allocation2 + $0x8] sm:$0xff]
    %v195 = vld [vmem:[#allocation2 + $0x18] sm:$0xff]
    %v196 = vld [vmem:[#allocation2 + $0x20] sm:$0xff]
    %v197 = vld [vmem:[#allocation8] sm:$0xff]
    %v198 = vld [vmem:[#allocation8 + $0x8] sm:$0xff]
    %v199 = vld [vmem:[#allocation8 + $0x10] sm:$0xff]
    %v200 = vld [vmem:[#allocation8 + $0x18] sm:$0xff]
    %v201 = vld [vmem:[#allocation8 + $0x20] sm:$0xff]
    %v202 = vld [vmem:[#allocation8 + $0x28] sm:$0xff]
    %v203 = vld [vmem:[#allocation8 + $0x30] sm:$0xff]
    %v204 = vld [vmem:[#allocation8 + $0x38] sm:$0xff]
    %v205 = vld [vmem:[#allocation2 + $0x1] sm:$0xff]
    %v206 = vld [vmem:[#allocation2 + $0x9] sm:$0xff]
    %v207 = vld [vmem:[#allocation2 + $0x19] sm:$0xff]
    %v208 = vld [vmem:[#allocation2 + $0x21] sm:$0xff]
    %s209 = scalar_lea.vmem [#allocation8], 64
    %v210 = vld [vmem:[%s209] sm:$0xff]
    %v211 = vld [vmem:[%s209 + $0x8] sm:$0xff]
    %v212 = vld [vmem:[%s209 + $0x10] sm:$0xff]
    %v213 = vld [vmem:[%s209 + $0x18] sm:$0xff]
    %v214 = vld [vmem:[%s209 + $0x20] sm:$0xff]
    %v215 = vld [vmem:[%s209 + $0x28] sm:$0xff]
    %v216 = vld [vmem:[%s209 + $0x30] sm:$0xff]
    %v217 = vld [vmem:[%s209 + $0x38] sm:$0xff]
    %v219 = vsel %vm188, %v205, 0
    %v222 = vsel %vm188, %v206, 0
    %v225 = vsel %vm188, %v207, 0
    %v228 = vsel %vm188, %v208, 0
    %230 = vmatpush.msra.mxu0 0.0
    %231 = vmatpush.msra.mxu0 0.0
    %232 = vmatpush.msra.mxu0 0.0
    %233 = vmatpush.msra.mxu0 0.0
    %234 = vmatpush.msra.mxu0 0.0
    %235 = vmatpush.msra.mxu0 0.0
    %236 = vmatpush.msra.mxu0 0.0
    %237 = vmatpush.msra.mxu0 0.0
    %238 = vmatpush.msra.mxu0 %v217
    %239 = vmatpush.msra.mxu0 %v216
    %240 = vmatpush.msra.mxu0 %v215
    %241 = vmatpush.msra.mxu0 %v214
    %242 = vmatpush.msra.mxu0 %v213
    %243 = vmatpush.msra.mxu0 %v212
    %244 = vmatpush.msra.mxu0 %v211
    %245 = vmatpush.msra.mxu0 %v210
    %246 = vmatmul.f32.gmra.mxu0 %v219
    %v247 = vpop.f32.mrf.mxu0
    %v248 = vadd.f32 0.0, %v247
    %249 = vmatmul.f32.gmra.mxu0 %v222
    %v250 = vpop.f32.mrf.mxu0
    %v251 = vadd.f32 0.0, %v250
    %252 = vmatmul.f32.gmra.mxu0 %v225
    %v253 = vpop.f32.mrf.mxu0
    %v254 = vadd.f32 0.0, %v253
    %255 = vmatmul.f32.gmra.mxu0 %v228
    %v256 = vpop.f32.mrf.mxu0
    %v257 = vadd.f32 0.0, %v256
    %258 = vdwg.mxu0
    %v260 = vsel %vm188, %v193, 0
    %v263 = vsel %vm188, %v194, 0
    %v266 = vsel %vm188, %v195, 0
    %v269 = vsel %vm188, %v196, 0
    %271 = vmatpush.msra.mxu0 0.0
    %272 = vmatpush.msra.mxu0 0.0
    %273 = vmatpush.msra.mxu0 0.0
    %274 = vmatpush.msra.mxu0 0.0
    %275 = vmatpush.msra.mxu0 0.0
    %276 = vmatpush.msra.mxu0 0.0
    %277 = vmatpush.msra.mxu0 0.0
    %278 = vmatpush.msra.mxu0 0.0
    %279 = vmatpush.msra.mxu0 %v204
    %280 = vmatpush.msra.mxu0 %v203
    %281 = vmatpush.msra.mxu0 %v202
    %282 = vmatpush.msra.mxu0 %v201
    %283 = vmatpush.msra.mxu0 %v200
    %284 = vmatpush.msra.mxu0 %v199
    %285 = vmatpush.msra.mxu0 %v198
    %286 = vmatpush.msra.mxu0 %v197
    %287 = vmatmul.f32.gmra.mxu0 %v260
    %v288 = vpop.f32.mrf.mxu0
    %v289 = vadd.f32 %v248, %v288
    %290 = vmatmul.f32.gmra.mxu0 %v263
    %v291 = vpop.f32.mrf.mxu0
    %v292 = vadd.f32 %v251, %v291
    %293 = vmatmul.f32.gmra.mxu0 %v266
    %v294 = vpop.f32.mrf.mxu0
    %v295 = vadd.f32 %v254, %v294
    %296 = vmatmul.f32.gmra.mxu0 %v269
    %v297 = vpop.f32.mrf.mxu0
    %v298 = vadd.f32 %v257, %v297
    %299 = vdwg.mxu0
    %v300 = vld [vmem:[#allocation2 + $0x2] sm:$0xff]
    %v301 = vld [vmem:[#allocation2 + $0xa] sm:$0xff]
    %v302 = vld [vmem:[#allocation2 + $0x1a] sm:$0xff]
    %v303 = vld [vmem:[#allocation2 + $0x22] sm:$0xff]
    %s304 = scalar_lea.vmem [#allocation8], 128
    %v305 = vld [vmem:[%s304] sm:$0xff]
    %v306 = vld [vmem:[%s304 + $0x8] sm:$0xff]
    %v307 = vld [vmem:[%s304 + $0x10] sm:$0xff]
    %v308 = vld [vmem:[%s304 + $0x18] sm:$0xff]
    %v309 = vld [vmem:[%s304 + $0x20] sm:$0xff]
    %v310 = vld [vmem:[%s304 + $0x28] sm:$0xff]
    %v311 = vld [vmem:[%s304 + $0x30] sm:$0xff]
    %v312 = vld [vmem:[%s304 + $0x38] sm:$0xff]
    %v314 = vsel %vm188, %v300, 0
    %v317 = vsel %vm188, %v301, 0
    %v320 = vsel %vm188, %v302, 0
    %v323 = vsel %vm188, %v303, 0
    %325 = vmatpush.msra.mxu0 0.0
    %326 = vmatpush.msra.mxu0 0.0
    %327 = vmatpush.msra.mxu0 0.0
    %328 = vmatpush.msra.mxu0 0.0
    %329 = vmatpush.msra.mxu0 0.0
    %330 = vmatpush.msra.mxu0 0.0
    %331 = vmatpush.msra.mxu0 0.0
    %332 = vmatpush.msra.mxu0 0.0
    %333 = vmatpush.msra.mxu0 %v312
    %334 = vmatpush.msra.mxu0 %v311
    %335 = vmatpush.msra.mxu0 %v310
    %336 = vmatpush.msra.mxu0 %v309
    %337 = vmatpush.msra.mxu0 %v308
    %338 = vmatpush.msra.mxu0 %v307
    %339 = vmatpush.msra.mxu0 %v306
    %340 = vmatpush.msra.mxu0 %v305
    %341 = vmatmul.f32.gmra.mxu0 %v314
    %v342 = vpop.f32.mrf.mxu0
    %v343 = vadd.f32 0.0, %v342
    %344 = vmatmul.f32.gmra.mxu0 %v317
    %v345 = vpop.f32.mrf.mxu0
    %v346 = vadd.f32 0.0, %v345
    %347 = vmatmul.f32.gmra.mxu0 %v320
    %v348 = vpop.f32.mrf.mxu0
    %v349 = vadd.f32 0.0, %v348
    %350 = vmatmul.f32.gmra.mxu0 %v323
    %v351 = vpop.f32.mrf.mxu0
    %v352 = vadd.f32 0.0, %v351
    %353 = vdwg.mxu0
    %v354 = vadd.f32 %v289, %v343
    %v355 = vadd.f32 %v292, %v346
    %v356 = vadd.f32 %v295, %v349
    %v357 = vadd.f32 %v298, %v352
    %v358 = vld [vmem:[#allocation11] sm:$0x1]
    %v359 = vld [vmem:[#allocation11 + $0x1] sm:$0x1]
    %v360 = vadd.f32 %v354, %v355
    %v361 = vadd.f32 %v360, %v356
    %v362 = vadd.f32 %v361, %v357
    %v363 = vrot.slane %v362, 4
    %v364 = vadd.f32 %v362, %v363
    %v365 = vrot.slane %v364, 2
    %v366 = vadd.f32 %v364, %v365
    %v367 = vrot.slane %v366, 1
    %v368 = vadd.f32 %v366, %v367
    %v369 = vmul.f32 %v354, %v354
    %v370 = vmul.f32 %v355, %v355
    %v371 = vmul.f32 %v356, %v356
    %v372 = vmul.f32 %v357, %v357
    %v373 = vadd.f32 %v369, %v370
    %v374 = vadd.f32 %v373, %v371
    %v375 = vadd.f32 %v374, %v372
    %v376 = vrot.slane %v375, 4
    %v377 = vadd.f32 %v375, %v376
    %v378 = vrot.slane %v377, 2
    %v379 = vadd.f32 %v377, %v378
    %v380 = vrot.slane %v379, 1
    %v381 = vadd.f32 %v379, %v380
    %vm382 = vcmp.eq.s32.totalorder %v80, 1
    %v383 = vsel %vm382, %v381, %v368
    %v384 = vld [vmem:[#allocation4] sm:$0xff]
    %v385 = vld [vmem:[#allocation4 + $0x8] sm:$0xff]
    %v386 = vld [vmem:[#allocation4 + $0x10] sm:$0xff]
    %v387 = vld [vmem:[#allocation4 + $0x18] sm:$0xff]
    %v388 = vld [vmem:[#allocation4 + $0x20] sm:$0xff]
    %v389 = vld [vmem:[#allocation4 + $0x28] sm:$0xff]
    %v390 = vld [vmem:[#allocation4 + $0x30] sm:$0xff]
    %v391 = vld [vmem:[#allocation4 + $0x38] sm:$0xff]
    %v392 = vld [vmem:[#allocation4 + $0x40] sm:$0xff]
    %v393 = vld [vmem:[#allocation4 + $0x48] sm:$0xff]
    %v394 = vld [vmem:[#allocation4 + $0x50] sm:$0xff]
    %v395 = vld [vmem:[#allocation4 + $0x58] sm:$0xff]
    %v396 = vld [vmem:[#allocation4 + $0x60] sm:$0xff]
    %v397 = vld [vmem:[#allocation4 + $0x68] sm:$0xff]
    %v398 = vld [vmem:[#allocation4 + $0x70] sm:$0xff]
    %v399 = vld [vmem:[#allocation4 + $0x78] sm:$0xff]
    %400 = vmatpush.msra.mxu0 %v399
    %401 = vmatpush.msra.mxu0 %v398
    %402 = vmatpush.msra.mxu0 %v397
    %403 = vmatpush.msra.mxu0 %v396
    %404 = vmatpush.msra.mxu0 %v395
    %405 = vmatpush.msra.mxu0 %v394
    %406 = vmatpush.msra.mxu0 %v393
    %407 = vmatpush.msra.mxu0 %v392
    %408 = vmatpush.msra.mxu0 %v391
    %409 = vmatpush.msra.mxu0 %v390
    %410 = vmatpush.msra.mxu0 %v389
    %411 = vmatpush.msra.mxu0 %v388
    %412 = vmatpush.msra.mxu0 %v387
    %413 = vmatpush.msra.mxu0 %v386
    %414 = vmatpush.msra.mxu0 %v385
    %415 = vmatpush.msra.mxu0 %v384
    %416 = vmatmul.f32.gmra.mxu0 %v383
    %v417 = vpop.f32.mrf.mxu0
    %v418 = vadd.f32 0.0, %v417
    %419 = vdwg.mxu0
    %v420 = vmul.f32 %v418, 0.001953125
    %v421 = vmul.f32 %v420, %v420
    %v423 = vrot.slane %v421, 7
    %v425 = vsub.f32 %v420, %v423
    %v426 = vadd.f32 %v425, 1e-05
    %v427 = vrsqrt.pop %v426
    %v428 = vmul.f32 %v427, %v426
    %v429 = vmul.f32 %v428, %v427
    %v430 = vmul.f32 0.5, %v429
    %v431 = vsub.f32 1.5, %v430
    %v432 = vmul.f32 %v427, %v431
    %vm433 = vweird.f32 %v426
    %vm434 = vweird.f32 %v427
    %vm435 = vmor %vm433, %vm434
    %v436 = vsel %vm435, %v427, %v432
    %v438 = vrot.slane %v436, 1
    %v440 = vmul.f32 %v358, %v438
    %v441 = vmul.f32 %v420, %v440
    %v442 = vsub.f32 %v359, %v441
    %v443 = vperm.slane %v440, 0
    %v444 = vmul.f32 %v354, %v443
    %v445 = vmul.f32 %v355, %v443
    %v446 = vmul.f32 %v356, %v443
    %v447 = vmul.f32 %v357, %v443
    %v448 = vperm.slane %v442, 0
    %v449 = vadd.f32 %v444, %v448
    %v450 = vadd.f32 %v445, %v448
    %v451 = vadd.f32 %v446, %v448
    %v452 = vadd.f32 %v447, %v448
    %v453 = vmax.f32 %v449, 0.0
    %v454 = vmax.f32 %v450, 0.0
    %v455 = vmax.f32 %v451, 0.0
    %v456 = vmax.f32 %v452, 0.0
    %457 = vst [vmem:[#allocation3] sm:$0x1] 0.0
    %458 = vst [vmem:[#allocation3 + $0x18] sm:$0x1] 0.0
    %459 = vst [vmem:[#allocation3 + $0x11] sm:$0x1] 0.0
    %460 = vst [vmem:[#allocation3 + $0x29] sm:$0x1] 0.0
    %461 = vst [vmem:[#allocation3 + $0x1] sm:$0xff] %v453
    %462 = vst [vmem:[#allocation3 + $0x9] sm:$0xff] %v454
    %463 = vst [vmem:[#allocation3 + $0x19] sm:$0xff] %v455
    %464 = vst [vmem:[#allocation3 + $0x21] sm:$0xff] %v456
    %v465 = vld [vmem:[#allocation3] sm:$0xff]
    %v466 = vld [vmem:[#allocation3 + $0x8] sm:$0xff]
    %v467 = vld [vmem:[#allocation3 + $0x18] sm:$0xff]
    %v468 = vld [vmem:[#allocation3 + $0x20] sm:$0xff]
    %v469 = vld [vmem:[#allocation3 + $0x1] sm:$0xff]
    %v470 = vld [vmem:[#allocation3 + $0x9] sm:$0xff]
    %v471 = vld [vmem:[#allocation3 + $0x19] sm:$0xff]
    %v472 = vld [vmem:[#allocation3 + $0x21] sm:$0xff]
    %v473 = vld [vmem:[#allocation3 + $0x2] sm:$0xff]
    %v474 = vld [vmem:[#allocation3 + $0xa] sm:$0xff]
    %v475 = vld [vmem:[#allocation3 + $0x1a] sm:$0xff]
    %v476 = vld [vmem:[#allocation3 + $0x22] sm:$0xff]
    %v477 = vld [vmem:[#allocation10] sm:$0xff]
    %v478 = vld [vmem:[#allocation10 + $0x8] sm:$0xff]
    %v479 = vld [vmem:[#allocation10 + $0x10] sm:$0xff]
    %v480 = vld [vmem:[#allocation10 + $0x18] sm:$0xff]
    %v481 = vld [vmem:[#allocation10 + $0x20] sm:$0xff]
    %v482 = vld [vmem:[#allocation10 + $0x28] sm:$0xff]
    %v483 = vld [vmem:[#allocation10 + $0x30] sm:$0xff]
    %v484 = vld [vmem:[#allocation10 + $0x38] sm:$0xff]
    %v485 = vld [vmem:[#allocation10 + $0x40] sm:$0xff]
    %v486 = vld [vmem:[#allocation10 + $0x48] sm:$0xff]
    %v487 = vld [vmem:[#allocation10 + $0x50] sm:$0xff]
    %v488 = vld [vmem:[#allocation10 + $0x58] sm:$0xff]
    %v489 = vld [vmem:[#allocation10 + $0x60] sm:$0xff]
    %v490 = vld [vmem:[#allocation10 + $0x68] sm:$0xff]
    %v491 = vld [vmem:[#allocation10 + $0x70] sm:$0xff]
    %v492 = vld [vmem:[#allocation10 + $0x78] sm:$0xff]
    %v493 = vld [vmem:[#allocation10 + $0x80] sm:$0xff]
    %v494 = vld [vmem:[#allocation10 + $0x88] sm:$0xff]
    %v495 = vld [vmem:[#allocation10 + $0x90] sm:$0xff]
    %v496 = vld [vmem:[#allocation10 + $0x98] sm:$0xff]
    %v497 = vld [vmem:[#allocation10 + $0xa0] sm:$0xff]
    %v498 = vld [vmem:[#allocation10 + $0xa8] sm:$0xff]
    %v499 = vld [vmem:[#allocation10 + $0xb0] sm:$0xff]
    %v500 = vld [vmem:[#allocation10 + $0xb8] sm:$0xff]
    %v501 = vld [vmem:[#allocation10 + $0xc0] sm:$0xff]
    %v502 = vld [vmem:[#allocation10 + $0xc8] sm:$0xff]
    %v503 = vld [vmem:[#allocation10 + $0xd0] sm:$0xff]
    %v504 = vld [vmem:[#allocation10 + $0xd8] sm:$0xff]
    %v505 = vld [vmem:[#allocation10 + $0xe0] sm:$0xff]
    %v506 = vld [vmem:[#allocation10 + $0xe8] sm:$0xff]
    %v507 = vld [vmem:[#allocation10 + $0xf0] sm:$0xff]
    %v508 = vld [vmem:[#allocation10 + $0xf8] sm:$0xff]
    %v509 = vld [vmem:[#allocation10 + $0x100] sm:$0xff]
    %v510 = vld [vmem:[#allocation10 + $0x108] sm:$0xff]
    %v511 = vld [vmem:[#allocation10 + $0x110] sm:$0xff]
    %v512 = vld [vmem:[#allocation10 + $0x118] sm:$0xff]
    %v513 = vld [vmem:[#allocation10 + $0x120] sm:$0xff]
    %v514 = vld [vmem:[#allocation10 + $0x128] sm:$0xff]
    %v515 = vld [vmem:[#allocation10 + $0x130] sm:$0xff]
    %v516 = vld [vmem:[#allocation10 + $0x138] sm:$0xff]
    %v517 = vld [vmem:[#allocation10 + $0x140] sm:$0xff]
    %v518 = vld [vmem:[#allocation10 + $0x148] sm:$0xff]
    %v519 = vld [vmem:[#allocation10 + $0x150] sm:$0xff]
    %v520 = vld [vmem:[#allocation10 + $0x158] sm:$0xff]
    %v521 = vld [vmem:[#allocation10 + $0x160] sm:$0xff]
    %v522 = vld [vmem:[#allocation10 + $0x168] sm:$0xff]
    %v523 = vld [vmem:[#allocation10 + $0x170] sm:$0xff]
    %v524 = vld [vmem:[#allocation10 + $0x178] sm:$0xff]
    %525 = vmatpush.msra.mxu0 %v492
    %526 = vmatpush.msra.mxu0 %v491
    %527 = vmatpush.msra.mxu0 %v490
    %528 = vmatpush.msra.mxu0 %v489
    %529 = vmatpush.msra.mxu0 %v488
    %530 = vmatpush.msra.mxu0 %v487
    %531 = vmatpush.msra.mxu0 %v486
    %532 = vmatpush.msra.mxu0 %v485
    %533 = vmatpush.msra.mxu0 %v484
    %534 = vmatpush.msra.mxu0 %v483
    %535 = vmatpush.msra.mxu0 %v482
    %536 = vmatpush.msra.mxu0 %v481
    %537 = vmatpush.msra.mxu0 %v480
    %538 = vmatpush.msra.mxu0 %v479
    %539 = vmatpush.msra.mxu0 %v478
    %540 = vmatpush.msra.mxu0 %v477
    %541 = vmatmul.f32.gmra.mxu0 %v465
    %v542 = vpop.f32.mrf.mxu0
    %v543 = vadd.f32 0.0, %v542
    %544 = vmatmul.f32.gmra.mxu0 %v466
    %v545 = vpop.f32.mrf.mxu0
    %v546 = vadd.f32 0.0, %v545
    %547 = vmatmul.f32.gmra.mxu0 %v467
    %v548 = vpop.f32.mrf.mxu0
    %v549 = vadd.f32 0.0, %v548
    %550 = vmatmul.f32.gmra.mxu0 %v468
    %v551 = vpop.f32.mrf.mxu0
    %v552 = vadd.f32 0.0, %v551
    %553 = vdwg.mxu0
    %554 = vmatpush.msra.mxu0 %v508
    %555 = vmatpush.msra.mxu0 %v507
    %556 = vmatpush.msra.mxu0 %v506
    %557 = vmatpush.msra.mxu0 %v505
    %558 = vmatpush.msra.mxu0 %v504
    %559 = vmatpush.msra.mxu0 %v503
    %560 = vmatpush.msra.mxu0 %v502
    %561 = vmatpush.msra.mxu0 %v501
    %562 = vmatpush.msra.mxu0 %v500
    %563 = vmatpush.msra.mxu0 %v499
    %564 = vmatpush.msra.mxu0 %v498
    %565 = vmatpush.msra.mxu0 %v497
    %566 = vmatpush.msra.mxu0 %v496
    %567 = vmatpush.msra.mxu0 %v495
    %568 = vmatpush.msra.mxu0 %v494
    %569 = vmatpush.msra.mxu0 %v493
    %570 = vmatmul.f32.gmra.mxu0 %v469
    %v571 = vpop.f32.mrf.mxu0
    %v572 = vadd.f32 %v543, %v571
    %573 = vmatmul.f32.gmra.mxu0 %v470
    %v574 = vpop.f32.mrf.mxu0
    %v575 = vadd.f32 %v546, %v574
    %576 = vmatmul.f32.gmra.mxu0 %v471
    %v577 = vpop.f32.mrf.mxu0
    %v578 = vadd.f32 %v549, %v577
    %579 = vmatmul.f32.gmra.mxu0 %v472
    %v580 = vpop.f32.mrf.mxu0
    %v581 = vadd.f32 %v552, %v580
    %582 = vdwg.mxu0
    %583 = vmatpush.msra.mxu0 %v524
    %584 = vmatpush.msra.mxu0 %v523
    %585 = vmatpush.msra.mxu0 %v522
    %586 = vmatpush.msra.mxu0 %v521
    %587 = vmatpush.msra.mxu0 %v520
    %588 = vmatpush.msra.mxu0 %v519
    %589 = vmatpush.msra.mxu0 %v518
    %590 = vmatpush.msra.mxu0 %v517
    %591 = vmatpush.msra.mxu0 %v516
    %592 = vmatpush.msra.mxu0 %v515
    %593 = vmatpush.msra.mxu0 %v514
    %594 = vmatpush.msra.mxu0 %v513
    %595 = vmatpush.msra.mxu0 %v512
    %596 = vmatpush.msra.mxu0 %v511
    %597 = vmatpush.msra.mxu0 %v510
    %598 = vmatpush.msra.mxu0 %v509
    %599 = vmatmul.f32.gmra.mxu0 %v473
    %v600 = vpop.f32.mrf.mxu0
    %v601 = vadd.f32 %v572, %v600
    %602 = vmatmul.f32.gmra.mxu0 %v474
    %v603 = vpop.f32.mrf.mxu0
    %v604 = vadd.f32 %v575, %v603
    %605 = vmatmul.f32.gmra.mxu0 %v475
    %v606 = vpop.f32.mrf.mxu0
    %v607 = vadd.f32 %v578, %v606
    %608 = vmatmul.f32.gmra.mxu0 %v476
    %v609 = vpop.f32.mrf.mxu0
    %v610 = vadd.f32 %v581, %v609
    %611 = vdwg.mxu0
    %v612 = vld [vmem:[#allocation11 + $0x2] sm:$0x1]
    %v613 = vld [vmem:[#allocation11 + $0x3] sm:$0x1]
    %v614 = vadd.f32 %v601, %v604
    %v615 = vadd.f32 %v614, %v607
    %v616 = vadd.f32 %v615, %v610
    %v617 = vrot.slane %v616, 4
    %v618 = vadd.f32 %v616, %v617
    %v619 = vrot.slane %v618, 2
    %v620 = vadd.f32 %v618, %v619
    %v621 = vrot.slane %v620, 1
    %v622 = vadd.f32 %v620, %v621
    %v623 = vmul.f32 %v601, %v601
    %v624 = vmul.f32 %v604, %v604
    %v625 = vmul.f32 %v607, %v607
    %v626 = vmul.f32 %v610, %v610
    %v627 = vadd.f32 %v623, %v624
    %v628 = vadd.f32 %v627, %v625
    %v629 = vadd.f32 %v628, %v626
    %v630 = vrot.slane %v629, 4
    %v631 = vadd.f32 %v629, %v630
    %v632 = vrot.slane %v631, 2
    %v633 = vadd.f32 %v631, %v632
    %v634 = vrot.slane %v633, 1
    %v635 = vadd.f32 %v633, %v634
    %v636 = vsel %vm382, %v635, %v622
    %v637 = vld [vmem:[#allocation4] sm:$0xff]
    %v638 = vld [vmem:[#allocation4 + $0x8] sm:$0xff]
    %v639 = vld [vmem:[#allocation4 + $0x10] sm:$0xff]
    %v640 = vld [vmem:[#allocation4 + $0x18] sm:$0xff]
    %v641 = vld [vmem:[#allocation4 + $0x20] sm:$0xff]
    %v642 = vld [vmem:[#allocation4 + $0x28] sm:$0xff]
    %v643 = vld [vmem:[#allocation4 + $0x30] sm:$0xff]
    %v644 = vld [vmem:[#allocation4 + $0x38] sm:$0xff]
    %v645 = vld [vmem:[#allocation4 + $0x40] sm:$0xff]
    %v646 = vld [vmem:[#allocation4 + $0x48] sm:$0xff]
    %v647 = vld [vmem:[#allocation4 + $0x50] sm:$0xff]
    %v648 = vld [vmem:[#allocation4 + $0x58] sm:$0xff]
    %v649 = vld [vmem:[#allocation4 + $0x60] sm:$0xff]
    %v650 = vld [vmem:[#allocation4 + $0x68] sm:$0xff]
    %v651 = vld [vmem:[#allocation4 + $0x70] sm:$0xff]
    %v652 = vld [vmem:[#allocation4 + $0x78] sm:$0xff]
    %653 = vmatpush.msra.mxu0 %v652
    %654 = vmatpush.msra.mxu0 %v651
    %655 = vmatpush.msra.mxu0 %v650
    %656 = vmatpush.msra.mxu0 %v649
    %657 = vmatpush.msra.mxu0 %v648
    %658 = vmatpush.msra.mxu0 %v647
    %659 = vmatpush.msra.mxu0 %v646
    %660 = vmatpush.msra.mxu0 %v645
    %661 = vmatpush.msra.mxu0 %v644
    %662 = vmatpush.msra.mxu0 %v643
    %663 = vmatpush.msra.mxu0 %v642
    %664 = vmatpush.msra.mxu0 %v641
    %665 = vmatpush.msra.mxu0 %v640
    %666 = vmatpush.msra.mxu0 %v639
    %667 = vmatpush.msra.mxu0 %v638
    %668 = vmatpush.msra.mxu0 %v637
    %669 = vmatmul.f32.gmra.mxu0 %v636
    %v670 = vpop.f32.mrf.mxu0
    %v671 = vadd.f32 0.0, %v670
    %672 = vdwg.mxu0
    %v673 = vmul.f32 %v671, 0.001953125
    %v674 = vmul.f32 %v673, %v673
    %v676 = vrot.slane %v674, 7
    %v678 = vsub.f32 %v673, %v676
    %v679 = vadd.f32 %v678, 1e-05
    %v680 = vrsqrt.pop %v679
    %v681 = vmul.f32 %v680, %v679
    %v682 = vmul.f32 %v681, %v680
    %v683 = vmul.f32 0.5, %v682
    %v684 = vsub.f32 1.5, %v683
    %v685 = vmul.f32 %v680, %v684
    %vm686 = vweird.f32 %v679
    %vm687 = vweird.f32 %v680
    %vm688 = vmor %vm686, %vm687
    %v689 = vsel %vm688, %v680, %v685
    %v691 = vrot.slane %v689, 1
    %v693 = vmul.f32 %v612, %v691
    %v694 = vmul.f32 %v673, %v693
    %v695 = vsub.f32 %v613, %v694
    %v696 = vperm.slane %v693, 0
    %v697 = vmul.f32 %v601, %v696
    %v698 = vmul.f32 %v604, %v696
    %v699 = vmul.f32 %v607, %v696
    %v700 = vmul.f32 %v610, %v696
    %v701 = vperm.slane %v695, 0
    %v702 = vadd.f32 %v697, %v701
    %v703 = vadd.f32 %v698, %v701
    %v704 = vadd.f32 %v699, %v701
    %v705 = vadd.f32 %v700, %v701
    %v706 = vmax.f32 %v702, 0.0
    %v707 = vmax.f32 %v703, 0.0
    %v708 = vmax.f32 %v704, 0.0
    %v709 = vmax.f32 %v705, 0.0
    %710 = vst [vmem:[#allocation13] sm:$0xff] %v706
    %711 = vst [vmem:[#allocation13 + $0x8] sm:$0xff] %v707
    %712 = vst [vmem:[#allocation13 + $0x10] sm:$0xff] %v708
    %713 = vst [vmem:[#allocation13 + $0x18] sm:$0xff] %v709
    // Predicated region
    $region34: #{tpu_custom_call.1} parent=1 // pred_check
      _
    $region35: #{tpu_custom_call.1} parent=1 // pred_check_branch
      %715 = sbr.rel (0) target = $region37
    $region36: #{tpu_custom_call.1} parent=1 // pred_region
      %717 = vsyncadd [#allocation7], 0
      %s718 = sshll.u32 [#allocation13], 4
      %s719 = int_to_ptr.vmem [resolvable:$true] %s718
      %s720 = sshll.u32 %s4, 4
      %s721 = int_to_ptr.hbm [resolvable:$true] %s720
      %726 = dma.vmem_to_hbm [thread:$0]  %s719, 512, %s721, [#allocation7], 128, 128, 8
    $region37: #{tpu_custom_call.1} parent=1 // pred_fallthru
      _
    // Predicated region
    $region38: #{tpu_custom_call.1} parent=1 // pred_check
      _
    $region39: #{tpu_custom_call.1} parent=1 // pred_check_branch
      %728 = sbr.rel (0) target = $region41
    $region40: #{tpu_custom_call.1} parent=1 // pred_region
      %730 = dma.done [#allocation7], 512
    $region41: #{tpu_custom_call.1} parent=1 // pred_fallthru
      _
    %731 = vsyncpa [#allocation6], 1
    %732 = vsyncpa [#allocation9], 1
    %733 = vsyncpa [#allocation12], 1
    %734 = vsyncpa [#allocation7], 1

</llo_original>
